<compile_context>
chip_gen: v6e
topology: v6e:2x2x1
jax: 0.10.0
libtpu: 0.0.40
codegen_flags: <defaults>
</compile_context>

<pallas_src>
import jax
import jax.numpy as jnp
from jax.experimental import pallas as pl
from jax.experimental.pallas import tpu as pltpu


def _round_up(x, m):
    return ((x + m - 1) // m) * m


def lstm_cell_kernel(x_ref, h0_ref, hdrop_ref, c0_ref, mask_ref,
                     wih_ref, whh_ref, bias_ref, h1_ref, c1_ref):
    """One LSTM cell step for a batch tile.

    x_ref    : (bb, I)   bf16
    h0_ref   : (bb, H)   f32   (blend path)
    hdrop_ref: (bb, H)   bf16  (matmul path; == h0 unless DropConnect)
    c0_ref   : (bb, H)   f32
    mask_ref : (bb, 1)   f32
    wih_ref  : (I, 4H)   bf16
    whh_ref  : (H, 4H)   bf16
    bias_ref : (1, 4H)   f32   (concat([bias_f, bias_iog]))
    h1_ref   : (bb, H)   f32
    c1_ref   : (bb, H)   f32
    """
    H = c0_ref.shape[1]

    # bf16 MXU matmuls, f32 accumulation.
    pre = jnp.dot(x_ref[...], wih_ref[...], preferred_element_type=jnp.float32)
    pre = pre + jnp.dot(hdrop_ref[...], whh_ref[...],
                        preferred_element_type=jnp.float32)
    pre = pre + bias_ref[...]

    # Gate order matches torch.split in the module: f, i, o, g.
    # f/i/o are contiguous -> one wide sigmoid (single EUP pass); tanh on g.
    sig = jax.nn.sigmoid(pre[:, :3 * H])
    f = sig[:, 0 * H:1 * H]
    i = sig[:, 1 * H:2 * H]
    o = sig[:, 2 * H:3 * H]
    g = jnp.tanh(pre[:, 3 * H:4 * H])

    c0 = c0_ref[...]
    h0 = h0_ref[...]
    m = mask_ref[...]                      # (bb, 1) -> lane-broadcast in the mul

    c1 = f * c0 + i * g
    c1 = c0 + m * (c1 - c0)                # lerp-form mask blend (exact for m in {0,1})
    h1 = o * jnp.tanh(c1)
    h1 = h0 + m * (h1 - h0)

    # Direct slice-free stores into two lane-dense (bb, H) output refs.
    h1_ref[...] = h1
    c1_ref[...] = c1


def lstm_cell_forward(x, mask, h0=None, c0=None, dropped_h0=None, *,
                      weight_ih, weight_hh, bias, block_b_max=256):
    """x: (B, I) f32, mask: (B,) f32, h0/c0/dropped_h0: (B, H) f32 or None.

    weight_ih: (I, 4H), weight_hh: (H, 4H), bias: (4H,) f32.
    Returns (h_1, c_1), each (B, H) f32.
    """
    B, I = x.shape
    H = weight_hh.shape[0]
    assert H % 128 == 0, "pad hidden_size to a multiple of 128 for lane-dense gates/stores"

    if h0 is None:
        h0 = jnp.zeros((B, H), jnp.float32)
    if c0 is None:
        c0 = jnp.zeros((B, H), jnp.float32)
    if dropped_h0 is None:
        dropped_h0 = h0

    # Weights: bf16 MXU operands (cast once, outside the hot path).
    w_ih = weight_ih.astype(jnp.bfloat16)
    w_hh = weight_hh.astype(jnp.bfloat16)
    bias2d = bias.reshape(1, 4 * H).astype(jnp.float32)

    # Batch tiling: rows a multiple of 8 (f32 sublane), pipelined over grid.
    block_b = min(_round_up(B, 8), block_b_max)
    Bp = _round_up(B, block_b)
    pad = Bp - B
    if pad:
        x = jnp.pad(x, ((0, pad), (0, 0)))
        h0 = jnp.pad(h0, ((0, pad), (0, 0)))
        c0 = jnp.pad(c0, ((0, pad), (0, 0)))
        dropped_h0 = jnp.pad(dropped_h0, ((0, pad), (0, 0)))
        mask = jnp.pad(mask, ((0, pad),))

    x_b = x.astype(jnp.bfloat16)
    hdrop_b = dropped_h0.astype(jnp.bfloat16)
    h0 = h0.astype(jnp.float32)
    c0 = c0.astype(jnp.float32)
    mask2d = mask.astype(jnp.float32).reshape(Bp, 1)

    grid = (Bp // block_b,)

    def row_spec(cols):
        return pl.BlockSpec((block_b, cols), lambda b: (b, 0))

    def const_spec(shape):
        return pl.BlockSpec(shape, lambda b: (0, 0))   # resident across grid steps

    bytes_accessed = (x_b.size * 2 + hdrop_b.size * 2 + h0.size * 4 + c0.size * 4
                      + mask2d.size * 4 + w_ih.size * 2 + w_hh.size * 2
                      + bias2d.size * 4 + 2 * Bp * H * 4)

    h1, c1 = pl.pallas_call(
        lstm_cell_kernel,
        out_shape=(jax.ShapeDtypeStruct((Bp, H), jnp.float32),
                   jax.ShapeDtypeStruct((Bp, H), jnp.float32)),
        grid=grid,
        in_specs=[
            row_spec(I),                 # x (bf16)
            row_spec(H),                 # h0 (f32, blend)
            row_spec(H),                 # dropped_h (bf16, matmul)
            row_spec(H),                 # c0
            row_spec(1),                 # mask (B,1)
            const_spec((I, 4 * H)),      # W_ih
            const_spec((H, 4 * H)),      # W_hh
            const_spec((1, 4 * H)),      # bias
        ],
        out_specs=(row_spec(H), row_spec(H)),
        compiler_params=pltpu.CompilerParams(
            dimension_semantics=("parallel",),
            vmem_limit_bytes=64 * 1024 * 1024),
        cost_estimate=pl.CostEstimate(
            flops=2 * Bp * (I + H) * 4 * H,
            transcendentals=5 * Bp * H,
            bytes_accessed=bytes_accessed),
    )(x_b, h0, hdrop_b, c0, mask2d, w_ih, w_hh, bias2d)

    if pad:
        h1, c1 = h1[:B], c1[:B]
    return h1, c1


def init_params(key, input_size, hidden_size):
    """Deterministic init mirroring reset_parameters()."""
    k_ih, k_hh = jax.random.split(key)
    # xavier-uniform for weight_ih
    limit = (6.0 / (input_size + 4 * hidden_size)) ** 0.5
    weight_ih = jax.random.uniform(k_ih, (input_size, 4 * hidden_size),
                                   minval=-limit, maxval=limit, dtype=jnp.float32)
    # orthogonal-ish for weight_hh via QR of a gaussian
    a = jax.random.normal(k_hh, (4 * hidden_size, hidden_size), dtype=jnp.float32)
    q, _ = jnp.linalg.qr(a)                        # (4H, H), orthonormal columns
    weight_hh = q.T.astype(jnp.float32)            # (H, 4H), orthonormal rows
    bias_f = jnp.ones((hidden_size,), jnp.float32)
    bias_iog = jnp.zeros((3 * hidden_size,), jnp.float32)
    bias = jnp.concatenate([bias_f, bias_iog])
    return weight_ih, weight_hh, bias


def reference_forward(x, mask, h0, c0, dropped_h0, weight_ih, weight_hh, bias):
    """Pure-JAX reference matching the PyTorch module (use_layernorm=False)."""
    pre = x @ weight_ih + dropped_h0 @ weight_hh + bias[None, :]
    f, i, o, g = jnp.split(pre, 4, axis=1)
    m = mask[:, None]
    c1 = jax.nn.sigmoid(f) * c0 + jax.nn.sigmoid(i) * jnp.tanh(g)
    c1 = c1 * m + c0 * (1 - m)
    h1 = jax.nn.sigmoid(o) * jnp.tanh(c1)
    h1 = h1 * m + h0 * (1 - m)
    return h1, c1


if __name__ == "__main__":
    B, I, H = 8, 64, 128
    key = jax.random.PRNGKey(0)
    k_x, k_h, k_c, k_d, k_p = jax.random.split(key, 5)

    x = jax.random.normal(k_x, (B, I), dtype=jnp.float32)
    h0 = jax.random.normal(k_h, (B, H), dtype=jnp.float32)
    c0 = jax.random.normal(k_c, (B, H), dtype=jnp.float32)
    mask = jnp.array([1, 1, 1, 0, 1, 0, 1, 1], dtype=jnp.float32)  # (B,)

    weight_ih, weight_hh, bias = init_params(k_p, I, H)

    def bf(a):  # bf16-round the MXU operands to match kernel numerics exactly
        return a.astype(jnp.bfloat16).astype(jnp.float32)

    # --- default path (dropped_h_0 is h_0) ---
    h1, c1 = lstm_cell_forward(x, mask, h0, c0,
                               weight_ih=weight_ih, weight_hh=weight_hh, bias=bias)
    jax.block_until_ready((h1, c1))

    h1_bref, c1_bref = reference_forward(bf(x), mask, h0, c0, bf(h0),
                                         bf(weight_ih), bf(weight_hh), bias)
    assert jnp.allclose(h1, h1_bref, atol=1e-4), "h_1 mismatch (bf16-matched ref)"
    assert jnp.allclose(c1, c1_bref, atol=1e-4), "c_1 mismatch (bf16-matched ref)"

    h1_f32, c1_f32 = reference_forward(x, mask, h0, c0, h0,
                                       weight_ih, weight_hh, bias)
    assert jnp.allclose(h1, h1_f32, atol=5e-2), "h_1 drifts too far from f32 ref"
    assert jnp.allclose(c1, c1_f32, atol=5e-2), "c_1 drifts too far from f32 ref"

    # --- DropConnect path (dropped_h_0 != h_0) ---
    drop = (jax.random.uniform(k_d, (B, H)) > 0.5).astype(jnp.float32)
    dropped_h0 = h0 * drop
    h1d, c1d = lstm_cell_forward(x, mask, h0, c0, dropped_h0,
                                 weight_ih=weight_ih, weight_hh=weight_hh, bias=bias)
    jax.block_until_ready((h1d, c1d))
    h1d_ref, c1d_ref = reference_forward(bf(x), mask, h0, c0, bf(dropped_h0),
                                         bf(weight_ih), bf(weight_hh), bias)
    assert jnp.allclose(h1d, h1d_ref, atol=1e-4), "h_1 mismatch (DropConnect path)"
    assert jnp.allclose(c1d, c1d_ref, atol=1e-4), "c_1 mismatch (DropConnect path)"

    print("KERNEL_OK")
</pallas_src>

<mosaic_0001>
module attributes {stable_mosaic.version = 11 : i64} {
  func.func @lstm_cell_kernel(%arg0: i32, %arg1: memref<8x64xbf16, #tpu.memory_space<vmem>>, %arg2: memref<8x128xf32, #tpu.memory_space<vmem>>, %arg3: memref<8x128xbf16, #tpu.memory_space<vmem>>, %arg4: memref<8x128xf32, #tpu.memory_space<vmem>>, %arg5: memref<8x1xf32, #tpu.memory_space<vmem>>, %arg6: memref<64x512xbf16, #tpu.memory_space<vmem>>, %arg7: memref<128x512xbf16, #tpu.memory_space<vmem>>, %arg8: memref<1x512xf32, #tpu.memory_space<vmem>>, %arg9: memref<8x128xf32, #tpu.memory_space<vmem>>, %arg10: memref<8x128xf32, #tpu.memory_space<vmem>>) attributes {dimension_semantics = [#tpu.dimension_semantics<parallel>], iteration_bounds = array<i64: 1>, scalar_prefetch = 0 : i64, scratch_operands = 0 : i64, tpu.core_type = #tpu.core_type<tc>, window_params = [{transform_indices = @transform_0, window_bounds = array<i64: 8, 64>}, {transform_indices = @transform_1, window_bounds = array<i64: 8, 128>}, {transform_indices = @transform_2, window_bounds = array<i64: 8, 128>}, {transform_indices = @transform_3, window_bounds = array<i64: 8, 128>}, {transform_indices = @transform_4, window_bounds = array<i64: 8, 1>}, {pipeline_mode = #tpu.pipeline_mode<synchronous>, transform_indices = @transform_5, window_bounds = array<i64: 64, 512>}, {pipeline_mode = #tpu.pipeline_mode<synchronous>, transform_indices = @transform_6, window_bounds = array<i64: 128, 512>}, {pipeline_mode = #tpu.pipeline_mode<synchronous>, transform_indices = @transform_7, window_bounds = array<i64: 1, 512>}, {transform_indices = @transform_8, window_bounds = array<i64: 8, 128>}, {transform_indices = @transform_9, window_bounds = array<i64: 8, 128>}]} {
    %c0 = arith.constant 0 : index
    %c0_0 = arith.constant 0 : index
    %0 = vector.load %arg1[%c0, %c0_0] : memref<8x64xbf16, #tpu.memory_space<vmem>>, vector<8x64xbf16>
    %c0_1 = arith.constant 0 : index
    %c0_2 = arith.constant 0 : index
    %1 = vector.load %arg6[%c0_1, %c0_2] : memref<64x512xbf16, #tpu.memory_space<vmem>>, vector<64x512xbf16>
    %cst = arith.constant dense<0.000000e+00> : vector<8x512xf32>
    %2 = tpu.matmul %0, %1, %cst {dimension_numbers = #tpu.dot_dimension_numbers<[1], [0], [0], [1], [0, 0, 1, 1], [], []>} : vector<8x64xbf16>, vector<64x512xbf16>, vector<8x512xf32> -> vector<8x512xf32>
    %c0_3 = arith.constant 0 : index
    %c0_4 = arith.constant 0 : index
    %3 = vector.load %arg3[%c0_3, %c0_4] : memref<8x128xbf16, #tpu.memory_space<vmem>>, vector<8x128xbf16>
    %c0_5 = arith.constant 0 : index
    %c0_6 = arith.constant 0 : index
    %4 = vector.load %arg7[%c0_5, %c0_6] : memref<128x512xbf16, #tpu.memory_space<vmem>>, vector<128x512xbf16>
    %cst_7 = arith.constant dense<0.000000e+00> : vector<8x512xf32>
    %5 = tpu.matmul %3, %4, %cst_7 {dimension_numbers = #tpu.dot_dimension_numbers<[1], [0], [0], [1], [0, 0, 1, 1], [], []>} : vector<8x128xbf16>, vector<128x512xbf16>, vector<8x512xf32> -> vector<8x512xf32>
    %6 = arith.addf %2, %5 : vector<8x512xf32>
    %c0_8 = arith.constant 0 : index
    %c0_9 = arith.constant 0 : index
    %7 = vector.load %arg8[%c0_8, %c0_9] : memref<1x512xf32, #tpu.memory_space<vmem>>, vector<1x512xf32>
    %8 = vector.broadcast %7 : vector<1x512xf32> to vector<8x512xf32>
    %9 = arith.addf %6, %8 : vector<8x512xf32>
    %10 = vector.extract_strided_slice %9 {offsets = [0, 0], sizes = [8, 384], strides = [1, 1]} : vector<8x512xf32> to vector<8x384xf32>
    %11 = arith.negf %10 : vector<8x384xf32>
    %12 = math.exp %11 : vector<8x384xf32>
    %cst_10 = arith.constant 1.000000e+00 : f32
    %13 = vector.broadcast %cst_10 : f32 to vector<8x384xf32>
    %14 = arith.addf %13, %12 : vector<8x384xf32>
    %15 = arith.divf %13, %14 : vector<8x384xf32>
    %16 = vector.extract_strided_slice %15 {offsets = [0, 0], sizes = [8, 128], strides = [1, 1]} : vector<8x384xf32> to vector<8x128xf32>
    %17 = vector.extract_strided_slice %15 {offsets = [0, 128], sizes = [8, 128], strides = [1, 1]} : vector<8x384xf32> to vector<8x128xf32>
    %18 = vector.extract_strided_slice %15 {offsets = [0, 256], sizes = [8, 128], strides = [1, 1]} : vector<8x384xf32> to vector<8x128xf32>
    %19 = vector.extract_strided_slice %9 {offsets = [0, 384], sizes = [8, 128], strides = [1, 1]} : vector<8x512xf32> to vector<8x128xf32>
    %20 = math.tanh %19 : vector<8x128xf32>
    %c0_11 = arith.constant 0 : index
    %c0_12 = arith.constant 0 : index
    %21 = vector.load %arg4[%c0_11, %c0_12] : memref<8x128xf32, #tpu.memory_space<vmem>>, vector<8x128xf32>
    %c0_13 = arith.constant 0 : index
    %c0_14 = arith.constant 0 : index
    %22 = vector.load %arg2[%c0_13, %c0_14] : memref<8x128xf32, #tpu.memory_space<vmem>>, vector<8x128xf32>
    %c0_15 = arith.constant 0 : index
    %c0_16 = arith.constant 0 : index
    %23 = vector.load %arg5[%c0_15, %c0_16] : memref<8x1xf32, #tpu.memory_space<vmem>>, vector<8x1xf32>
    %24 = arith.mulf %16, %21 : vector<8x128xf32>
    %25 = arith.mulf %17, %20 : vector<8x128xf32>
    %26 = arith.addf %24, %25 : vector<8x128xf32>
    %27 = arith.subf %26, %21 : vector<8x128xf32>
    %28 = vector.broadcast %23 : vector<8x1xf32> to vector<8x128xf32>
    %29 = arith.mulf %28, %27 : vector<8x128xf32>
    %30 = arith.addf %21, %29 : vector<8x128xf32>
    %31 = math.tanh %30 : vector<8x128xf32>
    %32 = arith.mulf %18, %31 : vector<8x128xf32>
    %33 = arith.subf %32, %22 : vector<8x128xf32>
    %34 = vector.broadcast %23 : vector<8x1xf32> to vector<8x128xf32>
    %35 = arith.mulf %34, %33 : vector<8x128xf32>
    %36 = arith.addf %22, %35 : vector<8x128xf32>
    %c0_17 = arith.constant 0 : index
    %c0_18 = arith.constant 0 : index
    %37 = vector.load %arg9[%c0_17, %c0_18] : memref<8x128xf32, #tpu.memory_space<vmem>>, vector<8x128xf32>
    tpu.vector_store %arg9[%c0_17, %c0_18], %36 {strides = array<i32>} : memref<8x128xf32, #tpu.memory_space<vmem>>, vector<8x128xf32>,
    %c0_19 = arith.constant 0 : index
    %c0_20 = arith.constant 0 : index
    %38 = vector.load %arg10[%c0_19, %c0_20] : memref<8x128xf32, #tpu.memory_space<vmem>>, vector<8x128xf32>
    tpu.vector_store %arg10[%c0_19, %c0_20], %30 {strides = array<i32>} : memref<8x128xf32, #tpu.memory_space<vmem>>, vector<8x128xf32>,
    return
  }
  func.func @transform_0(%arg0: i32) -> (i32, i32) {
    %c0_i32 = arith.constant 0 : i32
    %c0_i32_0 = arith.constant 0 : i32
    return %arg0, %c0_i32 : i32, i32
  }
  func.func @transform_1(%arg0: i32) -> (i32, i32) {
    %c0_i32 = arith.constant 0 : i32
    %c0_i32_0 = arith.constant 0 : i32
    return %arg0, %c0_i32 : i32, i32
  }
  func.func @transform_2(%arg0: i32) -> (i32, i32) {
    %c0_i32 = arith.constant 0 : i32
    %c0_i32_0 = arith.constant 0 : i32
    return %arg0, %c0_i32 : i32, i32
  }
  func.func @transform_3(%arg0: i32) -> (i32, i32) {
    %c0_i32 = arith.constant 0 : i32
    %c0_i32_0 = arith.constant 0 : i32
    return %arg0, %c0_i32 : i32, i32
  }
  func.func @transform_4(%arg0: i32) -> (i32, i32) {
    %c0_i32 = arith.constant 0 : i32
    %c0_i32_0 = arith.constant 0 : i32
    return %arg0, %c0_i32 : i32, i32
  }
  func.func @transform_5(%arg0: i32) -> (i32, i32) {
    %c0_i32 = arith.constant 0 : i32
    %c0_i32_0 = arith.constant 0 : i32
    %c0_i32_1 = arith.constant 0 : i32
    return %c0_i32, %c0_i32_0 : i32, i32
  }
  func.func @transform_6(%arg0: i32) -> (i32, i32) {
    %c0_i32 = arith.constant 0 : i32
    %c0_i32_0 = arith.constant 0 : i32
    %c0_i32_1 = arith.constant 0 : i32
    return %c0_i32, %c0_i32_0 : i32, i32
  }
  func.func @transform_7(%arg0: i32) -> (i32, i32) {
    %c0_i32 = arith.constant 0 : i32
    %c0_i32_0 = arith.constant 0 : i32
    %c0_i32_1 = arith.constant 0 : i32
    return %c0_i32, %c0_i32_0 : i32, i32
  }
  func.func @transform_8(%arg0: i32) -> (i32, i32) {
    %c0_i32 = arith.constant 0 : i32
    %c0_i32_0 = arith.constant 0 : i32
    return %arg0, %c0_i32 : i32, i32
  }
  func.func @transform_9(%arg0: i32) -> (i32, i32) {
    %c0_i32 = arith.constant 0 : i32
    %c0_i32_0 = arith.constant 0 : i32
    return %arg0, %c0_i32 : i32, i32
  }
}

</mosaic_0001>

<llo_original>
// kernel: tpu_custom_call.1
$region0: #{tpu_custom_call.1}
  #allocation0 [shape = 'u32[]', space=smem, size = 0x4, offset = 0x4, fixed_abs, tag = 'smem constant byte address 0x4 - core index']
  #allocation1 [shape = 'u32[144,128]{1,0:T(1,128)}', space=vmem, size = 0x12000, scoped, tag = 'internal scratch']
  %s0 = inlined_call_operand.hbm [shape: bf16[8,64], index: 0, kind: input, shape index: {}]
  %s1 = inlined_call_operand.vmem [shape: f32[8,128], index: 1, kind: input, shape index: {}]
  %s2 = inlined_call_operand.vmem [shape: bf16[8,128], index: 2, kind: input, shape index: {}]
  %s3 = inlined_call_operand.hbm [shape: f32[8,128], index: 3, kind: input, shape index: {}]
  %s4 = inlined_call_operand.vmem [shape: f32[8,1], index: 4, kind: input, shape index: {}]
  %s5 = inlined_call_operand.hbm [shape: bf16[64,512], index: 5, kind: input, shape index: {}]
  %s6 = inlined_call_operand.hbm [shape: bf16[128,512], index: 6, kind: input, shape index: {}]
  %s7 = inlined_call_operand.vmem [shape: f32[1,512], index: 7, kind: input, shape index: {}]
  %s8 = inlined_call_operand.hbm [shape: f32[8,128], index: 8, kind: output, shape index: {0}]
  %s9 = inlined_call_operand.hbm [shape: f32[8,128], index: 9, kind: output, shape index: {1}]
  %10 = xla_tuple %s8, %s9
  %s11 = sld [smem:[#allocation0]]
  $region66: #{tpu_custom_call.1} parent=0
    _
  %s13 = ssub.s32 1, %s11
  %s14 = scalar_select 0, %s13, %s11
  $region1: #{tpu_custom_call.1} parent=0
    #allocation2 [shape = 'u8[2048]{0}', space=vmem, size = 0x800, scoped, tag = 'input window, operand 0, single buffered']
    #allocation3 [shape = 's32[1]{0}', space=sflag, size = 0x4, scoped, tag = 'scoped memory for tpu_custom_call.1']
    #allocation4 [shape = 's32[1]{0}', space=sflag, size = 0x4, scoped, tag = 'scoped memory for tpu_custom_call.1']
    #allocation5 [shape = 'u8[4096]{0}', space=vmem, size = 0x1000, scoped, tag = 'input window, operand 3, single buffered']
    #allocation6 [shape = 's32[1]{0}', space=sflag, size = 0x4, scoped, tag = 'scoped memory for tpu_custom_call.1']
    #allocation7 [shape = 'u8[65536]{0}', space=vmem, size = 0x10000, scoped, tag = 'input window, operand 5, single buffered']
    #allocation8 [shape = 'u8[131072]{0}', space=vmem, size = 0x20000, scoped, tag = 'input window, operand 6, single buffered']
    #allocation9 [shape = 's32[1]{0}', space=sflag, size = 0x4, scoped, tag = 'scoped memory for tpu_custom_call.1']
    #allocation10 [shape = 'u8[4096]{0}', space=vmem, size = 0x1000, scoped, tag = 'output window, operand 0, single buffered']
    #allocation11 [shape = 'u8[4096]{0}', space=vmem, size = 0x1000, scoped, tag = 'output window, operand 1, single buffered']
    #allocation12 [shape = 's32[1]{0}', space=sflag, size = 0x4, scoped, tag = 'scoped memory for tpu_custom_call.1']
    %15 = vsyncpa [#allocation3], 0
    %16 = vsyncpa [#allocation6], 0
    %17 = vsyncpa [#allocation9], 0
    %18 = vsyncpa [#allocation4], 0
    %19 = vsyncpa [#allocation12], 0
    // Predicated region
    $region2: #{tpu_custom_call.1} parent=1 // pred_check
      _
    $region3: #{tpu_custom_call.1} parent=1 // pred_check_branch
      %21 = sbr.rel (0) target = $region5
    $region4: #{tpu_custom_call.1} parent=1 // pred_region
      %s23 = ssub.s32 64, 64
      %24 = vsyncadd [#allocation3], %s23
      %s26 = sshll.u32 [#allocation2], 4
      %s27 = int_to_ptr.vmem [resolvable:$true] %s26
      %29 = dma.hbm_to_vmem [thread:$0]  %s0, 64, %s27, [#allocation3]
    $region5: #{tpu_custom_call.1} parent=1 // pred_fallthru
      _
    // Predicated region
    $region6: #{tpu_custom_call.1} parent=1 // pred_check
      _
    $region7: #{tpu_custom_call.1} parent=1 // pred_check_branch
      %31 = sbr.rel (0) target = $region9
    $region8: #{tpu_custom_call.1} parent=1 // pred_region
      _
    $region9: #{tpu_custom_call.1} parent=1 // pred_fallthru
      _
    // Predicated region
    $region10: #{tpu_custom_call.1} parent=1 // pred_check
      _
    $region11: #{tpu_custom_call.1} parent=1 // pred_check_branch
      %33 = sbr.rel (0) target = $region13
    $region12: #{tpu_custom_call.1} parent=1 // pred_region
      _
    $region13: #{tpu_custom_call.1} parent=1 // pred_fallthru
      _
    // Predicated region
    $region14: #{tpu_custom_call.1} parent=1 // pred_check
      _
    $region15: #{tpu_custom_call.1} parent=1 // pred_check_branch
      %35 = sbr.rel (0) target = $region17
    $region16: #{tpu_custom_call.1} parent=1 // pred_region
      %s37 = ssub.s32 128, 128
      %38 = vsyncadd [#allocation6], %s37
      %s40 = sshll.u32 [#allocation5], 4
      %s41 = int_to_ptr.vmem [resolvable:$true] %s40
      %43 = dma.hbm_to_vmem [thread:$0]  %s3, 128, %s41, [#allocation6]
    $region17: #{tpu_custom_call.1} parent=1 // pred_fallthru
      _
    // Predicated region
    $region18: #{tpu_custom_call.1} parent=1 // pred_check
      _
    $region19: #{tpu_custom_call.1} parent=1 // pred_check_branch
      %45 = sbr.rel (0) target = $region21
    $region20: #{tpu_custom_call.1} parent=1 // pred_region
      _
    $region21: #{tpu_custom_call.1} parent=1 // pred_fallthru
      _
    // Predicated region
    $region22: #{tpu_custom_call.1} parent=1 // pred_check
      _
    $region23: #{tpu_custom_call.1} parent=1 // pred_check_branch
      %47 = sbr.rel (0) target = $region25
    $region24: #{tpu_custom_call.1} parent=1 // pred_region
      %s49 = ssub.s32 2048, 2048
      %50 = vsyncadd [#allocation6], %s49
      %s51 = sshll.u32 [#allocation7], 4
      %s52 = int_to_ptr.vmem [resolvable:$true] %s51
      %57 = dma.hbm_to_vmem [thread:$0]  %s5, 2048, %s52, [#allocation6], 256, 256, 16
    $region25: #{tpu_custom_call.1} parent=1 // pred_fallthru
      _
    // Predicated region
    $region26: #{tpu_custom_call.1} parent=1 // pred_check
      _
    $region27: #{tpu_custom_call.1} parent=1 // pred_check_branch
      %59 = sbr.rel (0) target = $region29
    $region28: #{tpu_custom_call.1} parent=1 // pred_region
      %s61 = ssub.s32 4096, 4096
      %62 = vsyncadd [#allocation9], %s61
      %s63 = sshll.u32 [#allocation8], 4
      %s64 = int_to_ptr.vmem [resolvable:$true] %s63
      %69 = dma.hbm_to_vmem [thread:$0]  %s6, 4096, %s64, [#allocation9], 256, 256, 16
    $region29: #{tpu_custom_call.1} parent=1 // pred_fallthru
      _
    // Predicated region
    $region30: #{tpu_custom_call.1} parent=1 // pred_check
      _
    $region31: #{tpu_custom_call.1} parent=1 // pred_check_branch
      %71 = sbr.rel (0) target = $region33
    $region32: #{tpu_custom_call.1} parent=1 // pred_region
      _
    $region33: #{tpu_custom_call.1} parent=1 // pred_fallthru
      _
    // Predicated region
    $region34: #{tpu_custom_call.1} parent=1 // pred_check
      _
    $region35: #{tpu_custom_call.1} parent=1 // pred_check_branch
      %73 = sbr.rel (0) target = $region37
    $region36: #{tpu_custom_call.1} parent=1 // pred_region
      %74 = dma.done [#allocation3], 64
    $region37: #{tpu_custom_call.1} parent=1 // pred_fallthru
      _
    // Predicated region
    $region38: #{tpu_custom_call.1} parent=1 // pred_check
      _
    $region39: #{tpu_custom_call.1} parent=1 // pred_check_branch
      %76 = sbr.rel (0) target = $region41
    $region40: #{tpu_custom_call.1} parent=1 // pred_region
      %77 = dma.done [#allocation6], 128
    $region41: #{tpu_custom_call.1} parent=1 // pred_fallthru
      _
    // Predicated region
    $region42: #{tpu_custom_call.1} parent=1 // pred_check
      _
    $region43: #{tpu_custom_call.1} parent=1 // pred_check_branch
      %79 = sbr.rel (0) target = $region45
    $region44: #{tpu_custom_call.1} parent=1 // pred_region
      %80 = dma.done [#allocation6], 2048
    $region45: #{tpu_custom_call.1} parent=1 // pred_fallthru
      _
    // Predicated region
    $region46: #{tpu_custom_call.1} parent=1 // pred_check
      _
    $region47: #{tpu_custom_call.1} parent=1 // pred_check_branch
      %82 = sbr.rel (0) target = $region49
    $region48: #{tpu_custom_call.1} parent=1 // pred_region
      %83 = dma.done [#allocation9], 4096
    $region49: #{tpu_custom_call.1} parent=1 // pred_fallthru
      _
    %v85 = vld [vmem:[#allocation2] sm:$0xf]
    %v86 = vld [vmem:[#allocation7] sm:$0xff]
    %v87 = vld [vmem:[#allocation7 + $0x8] sm:$0xff]
    %v88 = vld [vmem:[#allocation7 + $0x10] sm:$0xff]
    %v89 = vld [vmem:[#allocation7 + $0x18] sm:$0xff]
    %v90 = vld [vmem:[#allocation7 + $0x20] sm:$0xff]
    %v91 = vld [vmem:[#allocation7 + $0x28] sm:$0xff]
    %v92 = vld [vmem:[#allocation7 + $0x30] sm:$0xff]
    %v93 = vld [vmem:[#allocation7 + $0x38] sm:$0xff]
    %v94 = vld [vmem:[#allocation7 + $0x40] sm:$0xff]
    %v95 = vld [vmem:[#allocation7 + $0x48] sm:$0xff]
    %v96 = vld [vmem:[#allocation7 + $0x50] sm:$0xff]
    %v97 = vld [vmem:[#allocation7 + $0x58] sm:$0xff]
    %v98 = vld [vmem:[#allocation7 + $0x60] sm:$0xff]
    %v99 = vld [vmem:[#allocation7 + $0x68] sm:$0xff]
    %v100 = vld [vmem:[#allocation7 + $0x70] sm:$0xff]
    %v101 = vld [vmem:[#allocation7 + $0x78] sm:$0xff]
    %v102 = vld [vmem:[%s2] sm:$0xf]
    %v103 = vld [vmem:[#allocation8] sm:$0xff]
    %v104 = vld [vmem:[#allocation8 + $0x8] sm:$0xff]
    %v105 = vld [vmem:[#allocation8 + $0x10] sm:$0xff]
    %v106 = vld [vmem:[#allocation8 + $0x18] sm:$0xff]
    %v107 = vld [vmem:[#allocation8 + $0x20] sm:$0xff]
    %v108 = vld [vmem:[#allocation8 + $0x28] sm:$0xff]
    %v109 = vld [vmem:[#allocation8 + $0x30] sm:$0xff]
    %v110 = vld [vmem:[#allocation8 + $0x38] sm:$0xff]
    %v111 = vld [vmem:[#allocation8 + $0x40] sm:$0xff]
    %v112 = vld [vmem:[#allocation8 + $0x48] sm:$0xff]
    %v113 = vld [vmem:[#allocation8 + $0x50] sm:$0xff]
    %v114 = vld [vmem:[#allocation8 + $0x58] sm:$0xff]
    %v115 = vld [vmem:[#allocation8 + $0x60] sm:$0xff]
    %v116 = vld [vmem:[#allocation8 + $0x68] sm:$0xff]
    %v117 = vld [vmem:[#allocation8 + $0x70] sm:$0xff]
    %v118 = vld [vmem:[#allocation8 + $0x78] sm:$0xff]
    %v119 = vld [vmem:[#allocation8 + $0x80] sm:$0xff]
    %v120 = vld [vmem:[#allocation8 + $0x88] sm:$0xff]
    %v121 = vld [vmem:[#allocation8 + $0x90] sm:$0xff]
    %v122 = vld [vmem:[#allocation8 + $0x98] sm:$0xff]
    %v123 = vld [vmem:[#allocation8 + $0xa0] sm:$0xff]
    %v124 = vld [vmem:[#allocation8 + $0xa8] sm:$0xff]
    %v125 = vld [vmem:[#allocation8 + $0xb0] sm:$0xff]
    %v126 = vld [vmem:[#allocation8 + $0xb8] sm:$0xff]
    %v127 = vld [vmem:[#allocation8 + $0xc0] sm:$0xff]
    %v128 = vld [vmem:[#allocation8 + $0xc8] sm:$0xff]
    %v129 = vld [vmem:[#allocation8 + $0xd0] sm:$0xff]
    %v130 = vld [vmem:[#allocation8 + $0xd8] sm:$0xff]
    %v131 = vld [vmem:[#allocation8 + $0xe0] sm:$0xff]
    %v132 = vld [vmem:[#allocation8 + $0xe8] sm:$0xff]
    %v133 = vld [vmem:[#allocation8 + $0xf0] sm:$0xff]
    %v134 = vld [vmem:[#allocation8 + $0xf8] sm:$0xff]
    %v167 = vunpack.c.l.b16 %v103
    %v168 = vunpack.c.h.b16 %v103
    %v169 = vunpack.c.l.b16 %v104
    %v170 = vunpack.c.h.b16 %v104
    %v171 = vunpack.c.l.b16 %v105
    %v172 = vunpack.c.h.b16 %v105
    %v173 = vunpack.c.l.b16 %v106
    %v174 = vunpack.c.h.b16 %v106
    %v175 = vunpack.c.l.b16 %v107
    %v176 = vunpack.c.h.b16 %v107
    %v177 = vunpack.c.l.b16 %v108
    %v178 = vunpack.c.h.b16 %v108
    %v179 = vunpack.c.l.b16 %v109
    %v180 = vunpack.c.h.b16 %v109
    %v181 = vunpack.c.l.b16 %v110
    %v182 = vunpack.c.h.b16 %v110
    %v183 = vunpack.c.l.b16 %v111
    %v184 = vunpack.c.h.b16 %v111
    %v185 = vunpack.c.l.b16 %v112
    %v186 = vunpack.c.h.b16 %v112
    %v187 = vunpack.c.l.b16 %v113
    %v188 = vunpack.c.h.b16 %v113
    %v189 = vunpack.c.l.b16 %v114
    %v190 = vunpack.c.h.b16 %v114
    %v191 = vunpack.c.l.b16 %v115
    %v192 = vunpack.c.h.b16 %v115
    %v193 = vunpack.c.l.b16 %v116
    %v194 = vunpack.c.h.b16 %v116
    %v195 = vunpack.c.l.b16 %v117
    %v196 = vunpack.c.h.b16 %v117
    %v197 = vunpack.c.l.b16 %v118
    %v198 = vunpack.c.h.b16 %v118
    %v199 = vunpack.c.l.b16 %v119
    %v200 = vunpack.c.h.b16 %v119
    %v201 = vunpack.c.l.b16 %v120
    %v202 = vunpack.c.h.b16 %v120
    %v203 = vunpack.c.l.b16 %v121
    %v204 = vunpack.c.h.b16 %v121
    %v205 = vunpack.c.l.b16 %v122
    %v206 = vunpack.c.h.b16 %v122
    %v207 = vunpack.c.l.b16 %v123
    %v208 = vunpack.c.h.b16 %v123
    %v209 = vunpack.c.l.b16 %v124
    %v210 = vunpack.c.h.b16 %v124
    %v211 = vunpack.c.l.b16 %v125
    %v212 = vunpack.c.h.b16 %v125
    %v213 = vunpack.c.l.b16 %v126
    %v214 = vunpack.c.h.b16 %v126
    %v215 = vunpack.c.l.b16 %v127
    %v216 = vunpack.c.h.b16 %v127
    %v217 = vunpack.c.l.b16 %v128
    %v218 = vunpack.c.h.b16 %v128
    %v219 = vunpack.c.l.b16 %v129
    %v220 = vunpack.c.h.b16 %v129
    %v221 = vunpack.c.l.b16 %v130
    %v222 = vunpack.c.h.b16 %v130
    %v223 = vunpack.c.l.b16 %v131
    %v224 = vunpack.c.h.b16 %v131
    %v225 = vunpack.c.l.b16 %v132
    %v226 = vunpack.c.h.b16 %v132
    %v227 = vunpack.c.l.b16 %v133
    %v228 = vunpack.c.h.b16 %v133
    %v229 = vunpack.c.l.b16 %v134
    %v230 = vunpack.c.h.b16 %v134
    %v231 = vpack.c.b16 %v171, %v167
    %v232 = vpack.c.b16 %v172, %v168
    %v233 = vpack.c.b16 %v173, %v169
    %v234 = vpack.c.b16 %v174, %v170
    %v235 = vpack.c.b16 %v179, %v175
    %v236 = vpack.c.b16 %v180, %v176
    %v237 = vpack.c.b16 %v181, %v177
    %v238 = vpack.c.b16 %v182, %v178
    %v239 = vpack.c.b16 %v187, %v183
    %v240 = vpack.c.b16 %v188, %v184
    %v241 = vpack.c.b16 %v189, %v185
    %v242 = vpack.c.b16 %v190, %v186
    %v243 = vpack.c.b16 %v195, %v191
    %v244 = vpack.c.b16 %v196, %v192
    %v245 = vpack.c.b16 %v197, %v193
    %v246 = vpack.c.b16 %v198, %v194
    %v247 = vpack.c.b16 %v203, %v199
    %v248 = vpack.c.b16 %v204, %v200
    %v249 = vpack.c.b16 %v205, %v201
    %v250 = vpack.c.b16 %v206, %v202
    %v251 = vpack.c.b16 %v211, %v207
    %v252 = vpack.c.b16 %v212, %v208
    %v253 = vpack.c.b16 %v213, %v209
    %v254 = vpack.c.b16 %v214, %v210
    %v255 = vpack.c.b16 %v219, %v215
    %v256 = vpack.c.b16 %v220, %v216
    %v257 = vpack.c.b16 %v221, %v217
    %v258 = vpack.c.b16 %v222, %v218
    %v259 = vpack.c.b16 %v227, %v223
    %v260 = vpack.c.b16 %v228, %v224
    %v261 = vpack.c.b16 %v229, %v225
    %v262 = vpack.c.b16 %v230, %v226
    %295 = vmatprep.subr.bf16.mxu0 %v260
    %296 = vmatpush1.bf16.msra.mxu0 %v259
    %297 = vmatprep.subr.bf16.mxu0 %v256
    %298 = vmatpush1.bf16.msra.mxu0 %v255
    %299 = vmatprep.subr.bf16.mxu0 %v252
    %300 = vmatpush1.bf16.msra.mxu0 %v251
    %301 = vmatprep.subr.bf16.mxu0 %v248
    %302 = vmatpush1.bf16.msra.mxu0 %v247
    %303 = vmatprep.subr.bf16.mxu0 %v244
    %304 = vmatpush1.bf16.msra.mxu0 %v243
    %305 = vmatprep.subr.bf16.mxu0 %v240
    %306 = vmatpush1.bf16.msra.mxu0 %v239
    %307 = vmatprep.subr.bf16.mxu0 %v236
    %308 = vmatpush1.bf16.msra.mxu0 %v235
    %309 = vmatprep.subr.bf16.mxu0 %v232
    %310 = vmatpush1.bf16.msra.mxu0 %v231
    %311 = vmatprep.subr.bf16.mxu0 0
    %312 = vmatpush2.bf16.msra.mxu0 0
    %313 = vmatprep.subr.bf16.mxu0 0
    %314 = vmatpush2.bf16.msra.mxu0 0
    %315 = vmatprep.subr.bf16.mxu0 0
    %316 = vmatpush2.bf16.msra.mxu0 0
    %317 = vmatprep.subr.bf16.mxu0 0
    %318 = vmatpush2.bf16.msra.mxu0 0
    %319 = vmatprep.subr.bf16.mxu0 0
    %320 = vmatpush2.bf16.msra.mxu0 0
    %321 = vmatprep.subr.bf16.mxu0 0
    %322 = vmatpush2.bf16.msra.mxu0 0
    %323 = vmatprep.subr.bf16.mxu0 0
    %324 = vmatpush2.bf16.msra.mxu0 0
    %325 = vmatprep.subr.bf16.mxu0 0
    %326 = vmatpush2.bf16.msra.mxu0 0
    %327 = vmatprep.mubr.bf16.mxu0 0
    %328 = vmatmul.mubr.bf16.gmra.mxu0 %v102
    %v329 = vpop.f32.mrf.mxu0
    %v330 = vadd.f32 0.0, %v329
    %v331 = vpop.f32.mrf.mxu0
    %v332 = vadd.f32 0.0, %v331
    %v333 = vpop.f32.mrf.mxu0
    %v334 = vpop.f32.mrf.mxu0
    %335 = vdwg.mxu0
    %336 = vmatprep.subr.bf16.mxu0 %v262
    %337 = vmatpush1.bf16.msra.mxu0 %v261
    %338 = vmatprep.subr.bf16.mxu0 %v258
    %339 = vmatpush1.bf16.msra.mxu0 %v257
    %340 = vmatprep.subr.bf16.mxu0 %v254
    %341 = vmatpush1.bf16.msra.mxu0 %v253
    %342 = vmatprep.subr.bf16.mxu0 %v250
    %343 = vmatpush1.bf16.msra.mxu0 %v249
    %344 = vmatprep.subr.bf16.mxu0 %v246
    %345 = vmatpush1.bf16.msra.mxu0 %v245
    %346 = vmatprep.subr.bf16.mxu0 %v242
    %347 = vmatpush1.bf16.msra.mxu0 %v241
    %348 = vmatprep.subr.bf16.mxu0 %v238
    %349 = vmatpush1.bf16.msra.mxu0 %v237
    %350 = vmatprep.subr.bf16.mxu0 %v234
    %351 = vmatpush1.bf16.msra.mxu0 %v233
    %352 = vmatprep.subr.bf16.mxu0 0
    %353 = vmatpush2.bf16.msra.mxu0 0
    %354 = vmatprep.subr.bf16.mxu0 0
    %355 = vmatpush2.bf16.msra.mxu0 0
    %356 = vmatprep.subr.bf16.mxu0 0
    %357 = vmatpush2.bf16.msra.mxu0 0
    %358 = vmatprep.subr.bf16.mxu0 0
    %359 = vmatpush2.bf16.msra.mxu0 0
    %360 = vmatprep.subr.bf16.mxu0 0
    %361 = vmatpush2.bf16.msra.mxu0 0
    %362 = vmatprep.subr.bf16.mxu0 0
    %363 = vmatpush2.bf16.msra.mxu0 0
    %364 = vmatprep.subr.bf16.mxu0 0
    %365 = vmatpush2.bf16.msra.mxu0 0
    %366 = vmatprep.subr.bf16.mxu0 0
    %367 = vmatpush2.bf16.msra.mxu0 0
    %368 = vmatprep.mubr.bf16.mxu0 0
    %369 = vmatmul.mubr.bf16.gmra.mxu0 %v102
    %v370 = vpop.f32.mrf.mxu0
    %v371 = vadd.f32 0.0, %v370
    %v372 = vpop.f32.mrf.mxu0
    %v373 = vadd.f32 0.0, %v372
    %v374 = vpop.f32.mrf.mxu0
    %v375 = vpop.f32.mrf.mxu0
    %376 = vdwg.mxu0
    %v393 = vunpack.c.l.b16 %v86
    %v394 = vunpack.c.h.b16 %v86
    %v395 = vunpack.c.l.b16 %v87
    %v396 = vunpack.c.h.b16 %v87
    %v397 = vunpack.c.l.b16 %v88
    %v398 = vunpack.c.h.b16 %v88
    %v399 = vunpack.c.l.b16 %v89
    %v400 = vunpack.c.h.b16 %v89
    %v401 = vunpack.c.l.b16 %v90
    %v402 = vunpack.c.h.b16 %v90
    %v403 = vunpack.c.l.b16 %v91
    %v404 = vunpack.c.h.b16 %v91
    %v405 = vunpack.c.l.b16 %v92
    %v406 = vunpack.c.h.b16 %v92
    %v407 = vunpack.c.l.b16 %v93
    %v408 = vunpack.c.h.b16 %v93
    %v409 = vunpack.c.l.b16 %v94
    %v410 = vunpack.c.h.b16 %v94
    %v411 = vunpack.c.l.b16 %v95
    %v412 = vunpack.c.h.b16 %v95
    %v413 = vunpack.c.l.b16 %v96
    %v414 = vunpack.c.h.b16 %v96
    %v415 = vunpack.c.l.b16 %v97
    %v416 = vunpack.c.h.b16 %v97
    %v417 = vunpack.c.l.b16 %v98
    %v418 = vunpack.c.h.b16 %v98
    %v419 = vunpack.c.l.b16 %v99
    %v420 = vunpack.c.h.b16 %v99
    %v421 = vunpack.c.l.b16 %v100
    %v422 = vunpack.c.h.b16 %v100
    %v423 = vunpack.c.l.b16 %v101
    %v424 = vunpack.c.h.b16 %v101
    %v425 = vpack.c.b16 %v397, %v393
    %v426 = vpack.c.b16 %v398, %v394
    %v427 = vpack.c.b16 %v399, %v395
    %v428 = vpack.c.b16 %v400, %v396
    %v429 = vpack.c.b16 %v405, %v401
    %v430 = vpack.c.b16 %v406, %v402
    %v431 = vpack.c.b16 %v407, %v403
    %v432 = vpack.c.b16 %v408, %v404
    %v433 = vpack.c.b16 %v413, %v409
    %v434 = vpack.c.b16 %v414, %v410
    %v435 = vpack.c.b16 %v415, %v411
    %v436 = vpack.c.b16 %v416, %v412
    %v437 = vpack.c.b16 %v421, %v417
    %v438 = vpack.c.b16 %v422, %v418
    %v439 = vpack.c.b16 %v423, %v419
    %v440 = vpack.c.b16 %v424, %v420
    %vm457 = vcmask 523264
    %v459 = vsel %vm457, %v85, 0
    %461 = vmatprep.subr.bf16.mxu0 0
    %462 = vmatpush1.bf16.msra.mxu0 0
    %463 = vmatprep.subr.bf16.mxu0 0
    %464 = vmatpush1.bf16.msra.mxu0 0
    %465 = vmatprep.subr.bf16.mxu0 0
    %466 = vmatpush1.bf16.msra.mxu0 0
    %467 = vmatprep.subr.bf16.mxu0 0
    %468 = vmatpush1.bf16.msra.mxu0 0
    %469 = vmatprep.subr.bf16.mxu0 %v438
    %470 = vmatpush1.bf16.msra.mxu0 %v437
    %471 = vmatprep.subr.bf16.mxu0 %v434
    %472 = vmatpush1.bf16.msra.mxu0 %v433
    %473 = vmatprep.subr.bf16.mxu0 %v430
    %474 = vmatpush1.bf16.msra.mxu0 %v429
    %475 = vmatprep.subr.bf16.mxu0 %v426
    %476 = vmatpush1.bf16.msra.mxu0 %v425
    %477 = vmatprep.subr.bf16.mxu0 0
    %478 = vmatpush2.bf16.msra.mxu0 0
    %479 = vmatprep.subr.bf16.mxu0 0
    %480 = vmatpush2.bf16.msra.mxu0 0
    %481 = vmatprep.subr.bf16.mxu0 0
    %482 = vmatpush2.bf16.msra.mxu0 0
    %483 = vmatprep.subr.bf16.mxu0 0
    %484 = vmatpush2.bf16.msra.mxu0 0
    %485 = vmatprep.subr.bf16.mxu0 0
    %486 = vmatpush2.bf16.msra.mxu0 0
    %487 = vmatprep.subr.bf16.mxu0 0
    %488 = vmatpush2.bf16.msra.mxu0 0
    %489 = vmatprep.subr.bf16.mxu0 0
    %490 = vmatpush2.bf16.msra.mxu0 0
    %491 = vmatprep.subr.bf16.mxu0 0
    %492 = vmatpush2.bf16.msra.mxu0 0
    %493 = vmatprep.mubr.bf16.mxu0 0
    %494 = vmatmul.mubr.bf16.gmra.mxu0 %v459
    %v495 = vpop.f32.mrf.mxu0
    %v496 = vadd.f32 %v330, %v495
    %v497 = vpop.f32.mrf.mxu0
    %v498 = vadd.f32 %v332, %v497
    %v499 = vpop.f32.mrf.mxu0
    %v500 = vpop.f32.mrf.mxu0
    %501 = vdwg.mxu0
    %502 = vmatprep.subr.bf16.mxu0 0
    %503 = vmatpush1.bf16.msra.mxu0 0
    %504 = vmatprep.subr.bf16.mxu0 0
    %505 = vmatpush1.bf16.msra.mxu0 0
    %506 = vmatprep.subr.bf16.mxu0 0
    %507 = vmatpush1.bf16.msra.mxu0 0
    %508 = vmatprep.subr.bf16.mxu0 0
    %509 = vmatpush1.bf16.msra.mxu0 0
    %510 = vmatprep.subr.bf16.mxu0 %v440
    %511 = vmatpush1.bf16.msra.mxu0 %v439
    %512 = vmatprep.subr.bf16.mxu0 %v436
    %513 = vmatpush1.bf16.msra.mxu0 %v435
    %514 = vmatprep.subr.bf16.mxu0 %v432
    %515 = vmatpush1.bf16.msra.mxu0 %v431
    %516 = vmatprep.subr.bf16.mxu0 %v428
    %517 = vmatpush1.bf16.msra.mxu0 %v427
    %518 = vmatprep.subr.bf16.mxu0 0
    %519 = vmatpush2.bf16.msra.mxu0 0
    %520 = vmatprep.subr.bf16.mxu0 0
    %521 = vmatpush2.bf16.msra.mxu0 0
    %522 = vmatprep.subr.bf16.mxu0 0
    %523 = vmatpush2.bf16.msra.mxu0 0
    %524 = vmatprep.subr.bf16.mxu0 0
    %525 = vmatpush2.bf16.msra.mxu0 0
    %526 = vmatprep.subr.bf16.mxu0 0
    %527 = vmatpush2.bf16.msra.mxu0 0
    %528 = vmatprep.subr.bf16.mxu0 0
    %529 = vmatpush2.bf16.msra.mxu0 0
    %530 = vmatprep.subr.bf16.mxu0 0
    %531 = vmatpush2.bf16.msra.mxu0 0
    %532 = vmatprep.subr.bf16.mxu0 0
    %533 = vmatpush2.bf16.msra.mxu0 0
    %534 = vmatprep.mubr.bf16.mxu0 0
    %535 = vmatmul.mubr.bf16.gmra.mxu0 %v459
    %v536 = vpop.f32.mrf.mxu0
    %v537 = vadd.f32 %v371, %v536
    %v538 = vpop.f32.mrf.mxu0
    %v539 = vadd.f32 %v373, %v538
    %v540 = vpop.f32.mrf.mxu0
    %v541 = vpop.f32.mrf.mxu0
    %542 = vdwg.mxu0
    %v543 = vld [vmem:[%s7] sm:$0xf]
    %v545 = vlaneseq
    %v546 = vshrl.u32 %v545, 7
    %v547 = vsub.s32 0, %v546
    %v548 = vrot.slane %v543, %v547
    %v549 = vlaneseq
    %v550 = vshrl.u32 %v549, 7
    %v551 = vsub.s32 1, %v550
    %v552 = vrot.slane %v543, %v551
    %v553 = vlaneseq
    %v554 = vshrl.u32 %v553, 7
    %v555 = vsub.s32 2, %v554
    %v556 = vrot.slane %v543, %v555
    %v557 = vlaneseq
    %v558 = vshrl.u32 %v557, 7
    %v559 = vsub.s32 3, %v558
    %v560 = vrot.slane %v543, %v559
    %v565 = vadd.f32 %v496, %v548
    %v566 = vadd.f32 %v498, %v552
    %v567 = vadd.f32 %v537, %v556
    %v568 = vadd.f32 %v539, %v560
    %v569 = vxor.u32 %v565, 2147483648
    %v570 = vxor.u32 %v566, 2147483648
    %v571 = vxor.u32 %v567, 2147483648
    %v572 = vmul.f32 %v569, 1.442695
    %v573 = vpow.pop %v572
    %v574 = vmul.f32 %v570, 1.442695
    %v575 = vpow.pop %v574
    %v576 = vmul.f32 %v571, 1.442695
    %v577 = vpow.pop %v576
    %v578 = vadd.f32 %v573, 1.0
    %v579 = vadd.f32 %v575, 1.0
    %v580 = vadd.f32 %v577, 1.0
    %v581 = vrcp.pop %v578
    %v582 = vmul.f32 1.0, %v581
    %v583 = vrcp.pop %v579
    %v584 = vmul.f32 1.0, %v583
    %v585 = vrcp.pop %v580
    %v586 = vmul.f32 1.0, %v585
    %v587 = vtanh.pop %v568
    %v588 = vld [vmem:[#allocation5] sm:$0xff]
    %v589 = vld [vmem:[%s1] sm:$0xff]
    %v590 = vld [vmem:[%s4] sm:$0xff]
    %v591 = vmul.f32 %v582, %v588
    %v592 = vmul.f32 %v584, %v587
    %v593 = vadd.f32 %v591, %v592
    %v594 = vsub.f32 %v593, %v588
    %596 = vset.pattern.permute.xlu0 0
    %597 = vperm.xlu0 %596, %v590
    %v598 = vpop.permute.xlu0 %597
    %v600 = vmul.f32 %v598, %v594
    %v601 = vadd.f32 %v588, %v600
    %v602 = vtanh.pop %v601
    %v603 = vmul.f32 %v586, %v602
    %v604 = vsub.f32 %v603, %v589
    %v605 = vmul.f32 %v598, %v604
    %v606 = vadd.f32 %v589, %v605
    %607 = vst [vmem:[#allocation10] sm:$0xff] %v606
    %608 = vst [vmem:[#allocation11] sm:$0xff] %v601
    // Predicated region
    $region50: #{tpu_custom_call.1} parent=1 // pred_check
      _
    $region51: #{tpu_custom_call.1} parent=1 // pred_check_branch
      %610 = sbr.rel (0) target = $region53
    $region52: #{tpu_custom_call.1} parent=1 // pred_region
      %s612 = ssub.s32 128, 128
      %613 = vsyncadd [#allocation4], %s612
      %s615 = sshll.u32 [#allocation10], 4
      %s616 = int_to_ptr.vmem [resolvable:$true] %s615
      %618 = dma.vmem_to_hbm [thread:$0]  %s616, 128, %s8, [#allocation4]
    $region53: #{tpu_custom_call.1} parent=1 // pred_fallthru
      _
    // Predicated region
    $region54: #{tpu_custom_call.1} parent=1 // pred_check
      _
    $region55: #{tpu_custom_call.1} parent=1 // pred_check_branch
      %620 = sbr.rel (0) target = $region57
    $region56: #{tpu_custom_call.1} parent=1 // pred_region
      %s622 = ssub.s32 128, 128
      %623 = vsyncadd [#allocation12], %s622
      %s625 = sshll.u32 [#allocation11], 4
      %s626 = int_to_ptr.vmem [resolvable:$true] %s625
      %628 = dma.vmem_to_hbm [thread:$0]  %s626, 128, %s9, [#allocation12]
    $region57: #{tpu_custom_call.1} parent=1 // pred_fallthru
      _
    // Predicated region
    $region58: #{tpu_custom_call.1} parent=1 // pred_check
      _
    $region59: #{tpu_custom_call.1} parent=1 // pred_check_branch
      %630 = sbr.rel (0) target = $region61
    $region60: #{tpu_custom_call.1} parent=1 // pred_region
      %631 = dma.done [#allocation4], 128
    $region61: #{tpu_custom_call.1} parent=1 // pred_fallthru
      _
    // Predicated region
    $region62: #{tpu_custom_call.1} parent=1 // pred_check
      _
    $region63: #{tpu_custom_call.1} parent=1 // pred_check_branch
      %633 = sbr.rel (0) target = $region65
    $region64: #{tpu_custom_call.1} parent=1 // pred_region
      %634 = dma.done [#allocation12], 128
    $region65: #{tpu_custom_call.1} parent=1 // pred_fallthru
      _
    %635 = vsyncpa [#allocation3], 1
    %636 = vsyncpa [#allocation6], 1
    %637 = vsyncpa [#allocation9], 1
    %638 = vsyncpa [#allocation4], 1
    %639 = vsyncpa [#allocation12], 1

</llo_original>
